<compile_context>
chip_gen: v7x
topology: tpu7x:2x2x1
jax: 0.10.0
libtpu: 0.0.40
codegen_flags: <defaults>
</compile_context>

<pallas_src>
import jax
import jax.numpy as jnp
from jax.experimental import pallas as pl
from jax.experimental.pallas import tpu as pltpu


# ----------------------------------------------------------------------------
# Fused TZ kernel: initializer -> density head -> temperature head
# Per grid step (b, si): one batch, one time-tile of ts steps.
# ----------------------------------------------------------------------------
def _tz_fused_kernel(
    w_ref, x_ref,
    wi1_ref, bi1_ref, wi2t_ref, bi2_ref,                      # initializer
    wd1x_ref, wd1z_ref, bd1_ref, wd2t_ref, bd2_ref,           # density head
    wt1x_ref, wt1z_ref, bt1_ref, wt2t_ref, bt2_ref,           # temperature head
    t_ref, z_ref,
):
    f32 = jnp.float32
    w_row = w_ref[0]                       # (1, Fw)
    x2d = x_ref[0]                         # (ts, Fx)

    # --- initializer: z0 = MLP(w) ------------------------------------ (1, 1)
    h0 = jnp.dot(w_row, wi1_ref[...], preferred_element_type=f32) + bi1_ref[...]
    h0 = jnp.maximum(h0, 0.0)
    z0 = jnp.sum(h0 * wi2t_ref[...], axis=-1, keepdims=True) + bi2_ref[...]

    # --- density head: z = MLP([x, z0]) ------------------------------ (ts, 1)
    hd = jnp.dot(x2d, wd1x_ref[...], preferred_element_type=f32)
    hd = hd + z0 * wd1z_ref[...] + bd1_ref[...]                 # z0-branch on VPU
    hd = jnp.maximum(hd, 0.0)
    z_col = jnp.sum(hd * wd2t_ref[...], axis=-1, keepdims=True) + bd2_ref[...]

    # --- temperature head: t = MLP([x, z]) ---------------------------- (ts, 1)
    ht = jnp.dot(x2d, wt1x_ref[...], preferred_element_type=f32)
    ht = ht + z_col * wt1z_ref[...] + bt1_ref[...]              # z-branch on VPU
    ht = jnp.maximum(ht, 0.0)
    t_col = jnp.sum(ht * wt2t_ref[...], axis=-1, keepdims=True) + bt2_ref[...]

    z_ref[0] = z_col.astype(z_ref.dtype)
    t_ref[0] = t_col.astype(t_ref.dtype)


def _pick_time_tile(S):
    """Largest practical time tile; multiple of 8 (or full S) for the (8,128) rule."""
    if S <= 1024:
        return S
    for cand in (1024, 512, 256, 128, 64, 32, 16, 8):
        if S % cand == 0:
            return cand
    return S


def _split_head_params(p, fx):
    """MLP on concat([x, z]) -> split first layer + transposed second layer."""
    w1, b1, w2, b2 = p
    return dict(w1x=w1[:fx, :], w1z=w1[fx:, :], b1=b1, w2t=w2.T, b2=b2)


# ----------------------------------------------------------------------------
# TZRegressor forward:  (t, z) = forward(x, w)
# ----------------------------------------------------------------------------
@jax.jit
def tz_regressor_forward(params, x, w):
    B, S, Fx = x.shape
    Fw = w.shape[1]
    wi1, bi1, wi2, bi2 = params["initializer"]
    H = wi1.shape[1]
    assert wi2.shape[1] == 1, "kernel specialises the standard zdim = 1 config"

    dp = _split_head_params(params["density_regressor"], Fx)
    tp = _split_head_params(params["temperature_regressor"], Fx)

    ts = _pick_time_tile(S)
    grid = (B, S // ts)

    def full2(shape):
        return pl.BlockSpec(shape, lambda b, si: (0, 0))        # resident weights

    t, z = pl.pallas_call(
        _tz_fused_kernel,
        out_shape=(
            jax.ShapeDtypeStruct((B, S, 1), jnp.float32),       # t
            jax.ShapeDtypeStruct((B, S, 1), jnp.float32),       # z
        ),
        grid_spec=pltpu.PrefetchScalarGridSpec(
            num_scalar_prefetch=0,
            grid=grid,
            in_specs=[
                pl.BlockSpec((1, 1, Fw), lambda b, si: (b, 0, 0)),    # w (static feats)
                pl.BlockSpec((1, ts, Fx), lambda b, si: (b, si, 0)),  # x (drivers)
                # initializer
                full2((Fw, H)), full2((1, H)), full2((1, H)), full2((1, 1)),
                # density head (split W1, transposed W2)
                full2((Fx, H)), full2((1, H)), full2((1, H)), full2((1, H)), full2((1, 1)),
                # temperature head (split W1, transposed W2)
                full2((Fx, H)), full2((1, H)), full2((1, H)), full2((1, H)), full2((1, 1)),
            ],
            out_specs=[
                pl.BlockSpec((1, ts, 1), lambda b, si: (b, si, 0)),   # t
                pl.BlockSpec((1, ts, 1), lambda b, si: (b, si, 0)),   # z
            ],
        ),
        compiler_params=pltpu.CompilerParams(
            dimension_semantics=("parallel", "parallel")),
    )(
        w[:, None, :], x,
        wi1, bi1, wi2.T, bi2,
        dp["w1x"], dp["w1z"], dp["b1"], dp["w2t"], dp["b2"],
        tp["w1x"], tp["w1z"], tp["b1"], tp["w2t"], tp["b2"],
    )
    return t, z


# ----------------------------------------------------------------------------
# Deterministic parameter construction (synthetic; no checkpoint load)
# ----------------------------------------------------------------------------
def _init_mlp_params(key, fin, hidden, out):
    k1, k2, k3, k4 = jax.random.split(key, 4)
    w1 = jax.random.normal(k1, (fin, hidden), jnp.float32) * (1.0 / jnp.sqrt(fin))
    b1 = jax.random.normal(k2, (1, hidden), jnp.float32) * 0.01
    w2 = jax.random.normal(k3, (hidden, out), jnp.float32) * (1.0 / jnp.sqrt(hidden))
    b2 = jax.random.normal(k4, (1, out), jnp.float32) * 0.01
    return (w1, b1, w2, b2)


def make_tz_params(key, *, fx, fw, hidden, zdim=1, tdim=1):
    ki, kd, kt = jax.random.split(key, 3)
    return {
        "initializer":           _init_mlp_params(ki, fw,        hidden, zdim),
        "density_regressor":     _init_mlp_params(kd, fx + zdim, hidden, zdim),
        "temperature_regressor": _init_mlp_params(kt, fx + zdim, hidden, tdim),
    }


# ----------------------------------------------------------------------------
# Pure-JAX reference (uses the original concat formulation) for correctness.
# ----------------------------------------------------------------------------
def _mlp2_ref(x, w1, b1, w2, b2):
    return jnp.maximum(x @ w1 + b1, 0.0) @ w2 + b2


def _tz_ref(params, x, w):
    B, S, Fx = x.shape
    zdim = params["initializer"][2].shape[1]
    z0 = _mlp2_ref(w, *params["initializer"])
    z0_b = jnp.broadcast_to(z0[:, None, :], (B, S, zdim))
    xz0 = jnp.concatenate([x, z0_b], axis=-1).reshape(B * S, Fx + zdim)
    z = _mlp2_ref(xz0, *params["density_regressor"])
    xz = jnp.concatenate([x.reshape(B * S, Fx), z], axis=-1)
    t = _mlp2_ref(xz, *params["temperature_regressor"])
    return t.reshape(B, S, -1), z.reshape(B, S, -1)


if __name__ == "__main__":
    B, S, FX, FW, HIDDEN = 2, 8, 4, 6, 32

    key = jax.random.PRNGKey(0)
    kx, kw, kp = jax.random.split(key, 3)
    x = jax.random.normal(kx, (B, S, FX), jnp.float32)   # drivers
    w = jax.random.normal(kw, (B, FW), jnp.float32)      # static features
    params = make_tz_params(kp, fx=FX, fw=FW, hidden=HIDDEN)

    t, z = tz_regressor_forward(params, x, w)
    jax.block_until_ready((t, z))

    t_ref, z_ref = _tz_ref(params, x, w)
    assert t.shape == (B, S, 1) and z.shape == (B, S, 1)
    assert jnp.allclose(t, t_ref, atol=1e-4, rtol=1e-4)
    assert jnp.allclose(z, z_ref, atol=1e-4, rtol=1e-4)

    print("KERNEL_OK")
</pallas_src>

<mosaic_0001>
module attributes {stable_mosaic.version = 11 : i64} {
  func.func @_tz_fused_kernel(%arg0: i32, %arg1: i32, %arg2: memref<1x1x6xf32, #tpu.memory_space<vmem>>, %arg3: memref<1x8x4xf32, #tpu.memory_space<vmem>>, %arg4: memref<6x32xf32, #tpu.memory_space<vmem>>, %arg5: memref<1x32xf32, #tpu.memory_space<vmem>>, %arg6: memref<1x32xf32, #tpu.memory_space<vmem>>, %arg7: memref<1x1xf32, #tpu.memory_space<vmem>>, %arg8: memref<4x32xf32, #tpu.memory_space<vmem>>, %arg9: memref<1x32xf32, #tpu.memory_space<vmem>>, %arg10: memref<1x32xf32, #tpu.memory_space<vmem>>, %arg11: memref<1x32xf32, #tpu.memory_space<vmem>>, %arg12: memref<1x1xf32, #tpu.memory_space<vmem>>, %arg13: memref<4x32xf32, #tpu.memory_space<vmem>>, %arg14: memref<1x32xf32, #tpu.memory_space<vmem>>, %arg15: memref<1x32xf32, #tpu.memory_space<vmem>>, %arg16: memref<1x32xf32, #tpu.memory_space<vmem>>, %arg17: memref<1x1xf32, #tpu.memory_space<vmem>>, %arg18: memref<1x8x1xf32, #tpu.memory_space<vmem>>, %arg19: memref<1x8x1xf32, #tpu.memory_space<vmem>>) attributes {dimension_semantics = [#tpu.dimension_semantics<parallel>, #tpu.dimension_semantics<parallel>], iteration_bounds = array<i64: 2, 1>, scalar_prefetch = 0 : i64, scratch_operands = 0 : i64, tpu.core_type = #tpu.core_type<tc>, window_params = [{transform_indices = @transform_0, window_bounds = array<i64: 1, 1, 6>}, {transform_indices = @transform_1, window_bounds = array<i64: 1, 8, 4>}, {pipeline_mode = #tpu.pipeline_mode<synchronous>, transform_indices = @transform_2, window_bounds = array<i64: 6, 32>}, {pipeline_mode = #tpu.pipeline_mode<synchronous>, transform_indices = @transform_3, window_bounds = array<i64: 1, 32>}, {pipeline_mode = #tpu.pipeline_mode<synchronous>, transform_indices = @transform_4, window_bounds = array<i64: 1, 32>}, {pipeline_mode = #tpu.pipeline_mode<synchronous>, transform_indices = @transform_5, window_bounds = array<i64: 1, 1>}, {pipeline_mode = #tpu.pipeline_mode<synchronous>, transform_indices = @transform_6, window_bounds = array<i64: 4, 32>}, {pipeline_mode = #tpu.pipeline_mode<synchronous>, transform_indices = @transform_7, window_bounds = array<i64: 1, 32>}, {pipeline_mode = #tpu.pipeline_mode<synchronous>, transform_indices = @transform_8, window_bounds = array<i64: 1, 32>}, {pipeline_mode = #tpu.pipeline_mode<synchronous>, transform_indices = @transform_9, window_bounds = array<i64: 1, 32>}, {pipeline_mode = #tpu.pipeline_mode<synchronous>, transform_indices = @transform_10, window_bounds = array<i64: 1, 1>}, {pipeline_mode = #tpu.pipeline_mode<synchronous>, transform_indices = @transform_11, window_bounds = array<i64: 4, 32>}, {pipeline_mode = #tpu.pipeline_mode<synchronous>, transform_indices = @transform_12, window_bounds = array<i64: 1, 32>}, {pipeline_mode = #tpu.pipeline_mode<synchronous>, transform_indices = @transform_13, window_bounds = array<i64: 1, 32>}, {pipeline_mode = #tpu.pipeline_mode<synchronous>, transform_indices = @transform_14, window_bounds = array<i64: 1, 32>}, {pipeline_mode = #tpu.pipeline_mode<synchronous>, transform_indices = @transform_15, window_bounds = array<i64: 1, 1>}, {transform_indices = @transform_16, window_bounds = array<i64: 1, 8, 1>}, {transform_indices = @transform_17, window_bounds = array<i64: 1, 8, 1>}]} {
    %c0 = arith.constant 0 : index
    %c0_0 = arith.constant 0 : index
    %c0_1 = arith.constant 0 : index
    %0 = vector.load %arg2[%c0, %c0_0, %c0_1] : memref<1x1x6xf32, #tpu.memory_space<vmem>>, vector<1x1x6xf32>
    %1 = vector.shape_cast %0 : vector<1x1x6xf32> to vector<1x6xf32>
    %c0_2 = arith.constant 0 : index
    %c0_3 = arith.constant 0 : index
    %c0_4 = arith.constant 0 : index
    %2 = vector.load %arg3[%c0_2, %c0_3, %c0_4] : memref<1x8x4xf32, #tpu.memory_space<vmem>>, vector<1x8x4xf32>
    %3 = vector.shape_cast %2 : vector<1x8x4xf32> to vector<8x4xf32>
    %c0_5 = arith.constant 0 : index
    %c0_6 = arith.constant 0 : index
    %4 = vector.load %arg4[%c0_5, %c0_6] : memref<6x32xf32, #tpu.memory_space<vmem>>, vector<6x32xf32>
    %cst = arith.constant dense<0.000000e+00> : vector<1x32xf32>
    %5 = tpu.matmul %1, %4, %cst {dimension_numbers = #tpu.dot_dimension_numbers<[1], [0], [0], [1], [0, 0, 1, 1], [], []>} : vector<1x6xf32>, vector<6x32xf32>, vector<1x32xf32> -> vector<1x32xf32>
    %c0_7 = arith.constant 0 : index
    %c0_8 = arith.constant 0 : index
    %6 = vector.load %arg5[%c0_7, %c0_8] : memref<1x32xf32, #tpu.memory_space<vmem>>, vector<1x32xf32>
    %7 = arith.addf %5, %6 : vector<1x32xf32>
    %cst_9 = arith.constant 0.000000e+00 : f32
    %8 = vector.broadcast %cst_9 : f32 to vector<1x32xf32>
    %9 = arith.maximumf %7, %8 : vector<1x32xf32>
    %c0_10 = arith.constant 0 : index
    %c0_11 = arith.constant 0 : index
    %10 = vector.load %arg6[%c0_10, %c0_11] : memref<1x32xf32, #tpu.memory_space<vmem>>, vector<1x32xf32>
    %11 = arith.mulf %9, %10 : vector<1x32xf32>
    %cst_12 = arith.constant dense<0.000000e+00> : vector<1xf32>
    %12 = vector.multi_reduction <add>, %11, %cst_12 [1] : vector<1x32xf32> to vector<1xf32>
    %13 = vector.shape_cast %12 : vector<1xf32> to vector<1x1xf32>
    %c0_13 = arith.constant 0 : index
    %c0_14 = arith.constant 0 : index
    %14 = vector.load %arg7[%c0_13, %c0_14] : memref<1x1xf32, #tpu.memory_space<vmem>>, vector<1x1xf32>
    %15 = arith.addf %13, %14 : vector<1x1xf32>
    %c0_15 = arith.constant 0 : index
    %c0_16 = arith.constant 0 : index
    %16 = vector.load %arg8[%c0_15, %c0_16] : memref<4x32xf32, #tpu.memory_space<vmem>>, vector<4x32xf32>
    %cst_17 = arith.constant dense<0.000000e+00> : vector<8x32xf32>
    %17 = tpu.matmul %3, %16, %cst_17 {dimension_numbers = #tpu.dot_dimension_numbers<[1], [0], [0], [1], [0, 0, 1, 1], [], []>} : vector<8x4xf32>, vector<4x32xf32>, vector<8x32xf32> -> vector<8x32xf32>
    %c0_18 = arith.constant 0 : index
    %c0_19 = arith.constant 0 : index
    %18 = vector.load %arg9[%c0_18, %c0_19] : memref<1x32xf32, #tpu.memory_space<vmem>>, vector<1x32xf32>
    %19 = vector.broadcast %15 : vector<1x1xf32> to vector<1x32xf32>
    %20 = arith.mulf %19, %18 : vector<1x32xf32>
    %21 = vector.broadcast %20 : vector<1x32xf32> to vector<8x32xf32>
    %22 = arith.addf %17, %21 : vector<8x32xf32>
    %c0_20 = arith.constant 0 : index
    %c0_21 = arith.constant 0 : index
    %23 = vector.load %arg10[%c0_20, %c0_21] : memref<1x32xf32, #tpu.memory_space<vmem>>, vector<1x32xf32>
    %24 = vector.broadcast %23 : vector<1x32xf32> to vector<8x32xf32>
    %25 = arith.addf %22, %24 : vector<8x32xf32>
    %cst_22 = arith.constant 0.000000e+00 : f32
    %26 = vector.broadcast %cst_22 : f32 to vector<8x32xf32>
    %27 = arith.maximumf %25, %26 : vector<8x32xf32>
    %c0_23 = arith.constant 0 : index
    %c0_24 = arith.constant 0 : index
    %28 = vector.load %arg11[%c0_23, %c0_24] : memref<1x32xf32, #tpu.memory_space<vmem>>, vector<1x32xf32>
    %29 = vector.broadcast %28 : vector<1x32xf32> to vector<8x32xf32>
    %30 = arith.mulf %27, %29 : vector<8x32xf32>
    %cst_25 = arith.constant dense<0.000000e+00> : vector<8xf32>
    %31 = vector.multi_reduction <add>, %30, %cst_25 [1] : vector<8x32xf32> to vector<8xf32>
    %32 = vector.shape_cast %31 : vector<8xf32> to vector<8x1xf32>
    %c0_26 = arith.constant 0 : index
    %c0_27 = arith.constant 0 : index
    %33 = vector.load %arg12[%c0_26, %c0_27] : memref<1x1xf32, #tpu.memory_space<vmem>>, vector<1x1xf32>
    %34 = vector.broadcast %33 : vector<1x1xf32> to vector<8x1xf32>
    %35 = arith.addf %32, %34 : vector<8x1xf32>
    %c0_28 = arith.constant 0 : index
    %c0_29 = arith.constant 0 : index
    %36 = vector.load %arg13[%c0_28, %c0_29] : memref<4x32xf32, #tpu.memory_space<vmem>>, vector<4x32xf32>
    %cst_30 = arith.constant dense<0.000000e+00> : vector<8x32xf32>
    %37 = tpu.matmul %3, %36, %cst_30 {dimension_numbers = #tpu.dot_dimension_numbers<[1], [0], [0], [1], [0, 0, 1, 1], [], []>} : vector<8x4xf32>, vector<4x32xf32>, vector<8x32xf32> -> vector<8x32xf32>
    %c0_31 = arith.constant 0 : index
    %c0_32 = arith.constant 0 : index
    %38 = vector.load %arg14[%c0_31, %c0_32] : memref<1x32xf32, #tpu.memory_space<vmem>>, vector<1x32xf32>
    %39 = vector.broadcast %35 : vector<8x1xf32> to vector<8x32xf32>
    %40 = vector.broadcast %38 : vector<1x32xf32> to vector<8x32xf32>
    %41 = arith.mulf %39, %40 : vector<8x32xf32>
    %42 = arith.addf %37, %41 : vector<8x32xf32>
    %c0_33 = arith.constant 0 : index
    %c0_34 = arith.constant 0 : index
    %43 = vector.load %arg15[%c0_33, %c0_34] : memref<1x32xf32, #tpu.memory_space<vmem>>, vector<1x32xf32>
    %44 = vector.broadcast %43 : vector<1x32xf32> to vector<8x32xf32>
    %45 = arith.addf %42, %44 : vector<8x32xf32>
    %cst_35 = arith.constant 0.000000e+00 : f32
    %46 = vector.broadcast %cst_35 : f32 to vector<8x32xf32>
    %47 = arith.maximumf %45, %46 : vector<8x32xf32>
    %c0_36 = arith.constant 0 : index
    %c0_37 = arith.constant 0 : index
    %48 = vector.load %arg16[%c0_36, %c0_37] : memref<1x32xf32, #tpu.memory_space<vmem>>, vector<1x32xf32>
    %49 = vector.broadcast %48 : vector<1x32xf32> to vector<8x32xf32>
    %50 = arith.mulf %47, %49 : vector<8x32xf32>
    %cst_38 = arith.constant dense<0.000000e+00> : vector<8xf32>
    %51 = vector.multi_reduction <add>, %50, %cst_38 [1] : vector<8x32xf32> to vector<8xf32>
    %52 = vector.shape_cast %51 : vector<8xf32> to vector<8x1xf32>
    %c0_39 = arith.constant 0 : index
    %c0_40 = arith.constant 0 : index
    %53 = vector.load %arg17[%c0_39, %c0_40] : memref<1x1xf32, #tpu.memory_space<vmem>>, vector<1x1xf32>
    %54 = vector.broadcast %53 : vector<1x1xf32> to vector<8x1xf32>
    %55 = arith.addf %52, %54 : vector<8x1xf32>
    %c0_41 = arith.constant 0 : index
    %c0_42 = arith.constant 0 : index
    %c0_43 = arith.constant 0 : index
    %56 = vector.load %arg19[%c0_41, %c0_42, %c0_43] : memref<1x8x1xf32, #tpu.memory_space<vmem>>, vector<1x8x1xf32>
    %57 = vector.shape_cast %56 : vector<1x8x1xf32> to vector<8x1xf32>
    %58 = vector.shape_cast %35 : vector<8x1xf32> to vector<1x8x1xf32>
    tpu.vector_store %arg19[%c0_41, %c0_42, %c0_43], %58 {strides = array<i32>} : memref<1x8x1xf32, #tpu.memory_space<vmem>>, vector<1x8x1xf32>,
    %c0_44 = arith.constant 0 : index
    %c0_45 = arith.constant 0 : index
    %c0_46 = arith.constant 0 : index
    %59 = vector.load %arg18[%c0_44, %c0_45, %c0_46] : memref<1x8x1xf32, #tpu.memory_space<vmem>>, vector<1x8x1xf32>
    %60 = vector.shape_cast %59 : vector<1x8x1xf32> to vector<8x1xf32>
    %61 = vector.shape_cast %55 : vector<8x1xf32> to vector<1x8x1xf32>
    tpu.vector_store %arg18[%c0_44, %c0_45, %c0_46], %61 {strides = array<i32>} : memref<1x8x1xf32, #tpu.memory_space<vmem>>, vector<1x8x1xf32>,
    return
  }
  func.func @transform_0(%arg0: i32, %arg1: i32) -> (i32, i32, i32) {
    %c0_i32 = arith.constant 0 : i32
    %c0_i32_0 = arith.constant 0 : i32
    %c0_i32_1 = arith.constant 0 : i32
    return %arg0, %c0_i32, %c0_i32_0 : i32, i32, i32
  }
  func.func @transform_1(%arg0: i32, %arg1: i32) -> (i32, i32, i32) {
    %c0_i32 = arith.constant 0 : i32
    %c0_i32_0 = arith.constant 0 : i32
    return %arg0, %arg1, %c0_i32 : i32, i32, i32
  }
  func.func @transform_2(%arg0: i32, %arg1: i32) -> (i32, i32) {
    %c0_i32 = arith.constant 0 : i32
    %c0_i32_0 = arith.constant 0 : i32
    %c0_i32_1 = arith.constant 0 : i32
    return %c0_i32, %c0_i32_0 : i32, i32
  }
  func.func @transform_3(%arg0: i32, %arg1: i32) -> (i32, i32) {
    %c0_i32 = arith.constant 0 : i32
    %c0_i32_0 = arith.constant 0 : i32
    %c0_i32_1 = arith.constant 0 : i32
    return %c0_i32, %c0_i32_0 : i32, i32
  }
  func.func @transform_4(%arg0: i32, %arg1: i32) -> (i32, i32) {
    %c0_i32 = arith.constant 0 : i32
    %c0_i32_0 = arith.constant 0 : i32
    %c0_i32_1 = arith.constant 0 : i32
    return %c0_i32, %c0_i32_0 : i32, i32
  }
  func.func @transform_5(%arg0: i32, %arg1: i32) -> (i32, i32) {
    %c0_i32 = arith.constant 0 : i32
    %c0_i32_0 = arith.constant 0 : i32
    %c0_i32_1 = arith.constant 0 : i32
    return %c0_i32, %c0_i32_0 : i32, i32
  }
  func.func @transform_6(%arg0: i32, %arg1: i32) -> (i32, i32) {
    %c0_i32 = arith.constant 0 : i32
    %c0_i32_0 = arith.constant 0 : i32
    %c0_i32_1 = arith.constant 0 : i32
    return %c0_i32, %c0_i32_0 : i32, i32
  }
  func.func @transform_7(%arg0: i32, %arg1: i32) -> (i32, i32) {
    %c0_i32 = arith.constant 0 : i32
    %c0_i32_0 = arith.constant 0 : i32
    %c0_i32_1 = arith.constant 0 : i32
    return %c0_i32, %c0_i32_0 : i32, i32
  }
  func.func @transform_8(%arg0: i32, %arg1: i32) -> (i32, i32) {
    %c0_i32 = arith.constant 0 : i32
    %c0_i32_0 = arith.constant 0 : i32
    %c0_i32_1 = arith.constant 0 : i32
    return %c0_i32, %c0_i32_0 : i32, i32
  }
  func.func @transform_9(%arg0: i32, %arg1: i32) -> (i32, i32) {
    %c0_i32 = arith.constant 0 : i32
    %c0_i32_0 = arith.constant 0 : i32
    %c0_i32_1 = arith.constant 0 : i32
    return %c0_i32, %c0_i32_0 : i32, i32
  }
  func.func @transform_10(%arg0: i32, %arg1: i32) -> (i32, i32) {
    %c0_i32 = arith.constant 0 : i32
    %c0_i32_0 = arith.constant 0 : i32
    %c0_i32_1 = arith.constant 0 : i32
    return %c0_i32, %c0_i32_0 : i32, i32
  }
  func.func @transform_11(%arg0: i32, %arg1: i32) -> (i32, i32) {
    %c0_i32 = arith.constant 0 : i32
    %c0_i32_0 = arith.constant 0 : i32
    %c0_i32_1 = arith.constant 0 : i32
    return %c0_i32, %c0_i32_0 : i32, i32
  }
  func.func @transform_12(%arg0: i32, %arg1: i32) -> (i32, i32) {
    %c0_i32 = arith.constant 0 : i32
    %c0_i32_0 = arith.constant 0 : i32
    %c0_i32_1 = arith.constant 0 : i32
    return %c0_i32, %c0_i32_0 : i32, i32
  }
  func.func @transform_13(%arg0: i32, %arg1: i32) -> (i32, i32) {
    %c0_i32 = arith.constant 0 : i32
    %c0_i32_0 = arith.constant 0 : i32
    %c0_i32_1 = arith.constant 0 : i32
    return %c0_i32, %c0_i32_0 : i32, i32
  }
  func.func @transform_14(%arg0: i32, %arg1: i32) -> (i32, i32) {
    %c0_i32 = arith.constant 0 : i32
    %c0_i32_0 = arith.constant 0 : i32
    %c0_i32_1 = arith.constant 0 : i32
    return %c0_i32, %c0_i32_0 : i32, i32
  }
  func.func @transform_15(%arg0: i32, %arg1: i32) -> (i32, i32) {
    %c0_i32 = arith.constant 0 : i32
    %c0_i32_0 = arith.constant 0 : i32
    %c0_i32_1 = arith.constant 0 : i32
    return %c0_i32, %c0_i32_0 : i32, i32
  }
  func.func @transform_16(%arg0: i32, %arg1: i32) -> (i32, i32, i32) {
    %c0_i32 = arith.constant 0 : i32
    %c0_i32_0 = arith.constant 0 : i32
    return %arg0, %arg1, %c0_i32 : i32, i32, i32
  }
  func.func @transform_17(%arg0: i32, %arg1: i32) -> (i32, i32, i32) {
    %c0_i32 = arith.constant 0 : i32
    %c0_i32_0 = arith.constant 0 : i32
    return %arg0, %arg1, %c0_i32 : i32, i32, i32
  }
}

</mosaic_0001>

<llo_original>
// kernel: tz_regressor_forward.1
$region0: #{tz_regressor_forward.1}
  #allocation0 [shape = 'u32[]', space=smem, size = 0x4, offset = 0x4, fixed_abs, tag = 'smem constant byte address 0x4 - core index']
  #allocation1 [shape = 'u32[144,128]{1,0:T(1,128)}', space=vmem, size = 0x12000, scoped, tag = 'internal scratch']
  #allocation2 [shape = 'f32[1,1]{1,0:T(1,128)S(1)}', space=vmem, size = 0x200, scoped, tag = 'scoped memory for tz_regressor_forward.1']
  #allocation3 [shape = 'f32[1,1]{1,0:T(1,128)S(1)}', space=vmem, size = 0x200, scoped, tag = 'scoped memory for tz_regressor_forward.1']
  #allocation4 [shape = 'f32[1,1]{1,0:T(1,128)S(1)}', space=vmem, size = 0x200, scoped, tag = 'scoped memory for tz_regressor_forward.1']
  %s0 = inlined_call_operand.vmem [shape: f32[2,1,6], index: 0, kind: input, shape index: {}]
  %s1 = inlined_call_operand.vmem [shape: f32[2,8,4], index: 1, kind: input, shape index: {}]
  %s2 = inlined_call_operand.vmem [shape: f32[6,32], index: 2, kind: input, shape index: {}]
  %s3 = inlined_call_operand.vmem [shape: f32[1,32], index: 3, kind: input, shape index: {}]
  %s4 = inlined_call_operand.vmem [shape: f32[1,32], index: 4, kind: input, shape index: {}]
  %s5 = inlined_call_operand.<no memory space> [shape: f32[1,1], index: 5, kind: input, shape index: {}]
  %s6 = inlined_call_operand.vmem [shape: f32[4,32], index: 6, kind: input, shape index: {}]
  %s7 = inlined_call_operand.vmem [shape: f32[1,32], index: 7, kind: input, shape index: {}]
  %s8 = inlined_call_operand.vmem [shape: f32[1,32], index: 8, kind: input, shape index: {}]
  %s9 = inlined_call_operand.vmem [shape: f32[1,32], index: 9, kind: input, shape index: {}]
  %s10 = inlined_call_operand.<no memory space> [shape: f32[1,1], index: 10, kind: input, shape index: {}]
  %s11 = inlined_call_operand.vmem [shape: f32[4,32], index: 11, kind: input, shape index: {}]
  %s12 = inlined_call_operand.vmem [shape: f32[1,32], index: 12, kind: input, shape index: {}]
  %s13 = inlined_call_operand.vmem [shape: f32[1,32], index: 13, kind: input, shape index: {}]
  %s14 = inlined_call_operand.vmem [shape: f32[1,32], index: 14, kind: input, shape index: {}]
  %s15 = inlined_call_operand.<no memory space> [shape: f32[1,1], index: 15, kind: input, shape index: {}]
  %s16 = inlined_call_operand.vmem [shape: f32[2,8,1], index: 16, kind: output, shape index: {0}]
  %s17 = inlined_call_operand.vmem [shape: f32[2,8,1], index: 17, kind: output, shape index: {1}]
  %18 = xla_tuple %s16, %s17
  %s19 = sld [smem:[#allocation0]]
  $region105: #{tz_regressor_forward.1} parent=0
    _
  %s21 = ssub.s32 1, %s19
  %s22 = scalar_select 0, %s21, %s19
  %v23 = vstv %s5
  %24 = vst [vmem:[#allocation2] sm:$0x1] %v23
  %v25 = vstv %s10
  %26 = vst [vmem:[#allocation3] sm:$0x1] %v25
  %v27 = vstv %s15
  %28 = vst [vmem:[#allocation4] sm:$0x1] %v27
  loop: start=0, step=1, limit=4
  $region2: #{tz_regressor_forward.1} parent=0 // loop_pre_header
    _
  $region3: #{tz_regressor_forward.1} parent=0 // loop_header
    %s30 = sphi 0, %s34
    %p31 = scmp.ge.s32.totalorder %s30, 4
    %s37 = sphi 0, %s49
    %s38 = sphi 0, %s45
    %s39 = sphi 0, %s37
    %s40 = sphi 0, %s38
    %s41 = sphi 0, %s39
    %s42 = sphi 0, %s40
    %s52 = sphi 0, %s54
    %s55 = sphi 0, %s52
    %s56 = sphi 0, %s55
    %s72 = sphi 0, %s56
    %s80 = sphi 0, %s82
    %s83 = sphi 0, %s80
    %s84 = sphi 0, %s83
    %s100 = sphi 0, %s84
    %s104 = sphi 0, %s104
    %s106 = sphi 0, %s104
    %s107 = sphi 0, %s106
    %s121 = sphi 0, %s107
    %s125 = sphi 0, %s125
    %s127 = sphi 0, %s125
    %s128 = sphi 0, %s127
    %s142 = sphi 0, %s128
    %s146 = sphi 0, %s146
    %s148 = sphi 0, %s146
    %s149 = sphi 0, %s148
    %s163 = sphi 0, %s149
    %s167 = sphi 0, %s167
    %s169 = sphi 0, %s167
    %s170 = sphi 0, %s169
    %s184 = sphi 0, %s170
    %s188 = sphi 0, %s188
    %s190 = sphi 0, %s188
    %s191 = sphi 0, %s190
    %s205 = sphi 0, %s191
    %s209 = sphi 0, %s209
    %s211 = sphi 0, %s209
    %s212 = sphi 0, %s211
    %s226 = sphi 0, %s212
    %s230 = sphi 0, %s230
    %s232 = sphi 0, %s230
    %s233 = sphi 0, %s232
    %s247 = sphi 0, %s233
    %s251 = sphi 0, %s251
    %s253 = sphi 0, %s251
    %s254 = sphi 0, %s253
    %s268 = sphi 0, %s254
    %s272 = sphi 0, %s272
    %s274 = sphi 0, %s272
    %s275 = sphi 0, %s274
    %s289 = sphi 0, %s275
    %s293 = sphi 0, %s293
    %s295 = sphi 0, %s293
    %s296 = sphi 0, %s295
    %s310 = sphi 0, %s296
    %s314 = sphi 0, %s314
    %s316 = sphi 0, %s314
    %s317 = sphi 0, %s316
    %s331 = sphi 0, %s317
    %s335 = sphi 0, %s335
    %s337 = sphi 0, %s335
    %s338 = sphi 0, %s337
    %s352 = sphi 0, %s338
    %s356 = sphi 0, %s356
    %s358 = sphi 0, %s356
    %s359 = sphi 0, %s358
    %s373 = sphi 0, %s359
    %s377 = sphi 0, %s377
    %s379 = sphi 0, %s377
    %s380 = sphi 0, %s379
    %s394 = sphi 0, %s380
    %s402 = sphi 0, %s404
    %s405 = sphi 0, %s402
    %s406 = sphi 0, %s405
    %s422 = sphi 0, %s406
    %s430 = sphi 0, %s432
    %s433 = sphi 0, %s430
    %s434 = sphi 0, %s433
    %s450 = sphi 0, %s434
  $region4: #{tz_regressor_forward.1} parent=0 // loop_header_branch
    %33 = sbr.rel (%p31) target = $region8
  $region5: #{tz_regressor_forward.1} parent=0 // loop_body
    %s35 = ssub.s32 %s30, 1
    %s36 = ssub.s32 %s30, 2
    %s43 = sadd.s32 1, %s38
    %p44 = scmp.ge.s32.totalorder %s43, 1
    %s45 = scalar_select %p44, 0, %s43
    %s46 = sadd.s32 1, %s37
    %s47 = scalar_select %p44, %s46, %s37
    %p48 = scmp.ge.s32.totalorder %s47, 2
    %s49 = scalar_select %p48, 0, %s47
    %s50 = ssub.s32 %s37, %s49
    %p51 = scmp.eq.s32.totalorder %s50, 0
    %s53 = sadd.s32 %s52, 1
    %s54 = scalar_select %p51, %s52, %s53
    %p57 = pneg %p51
    %p58 = scmp.eq.s32.totalorder %s30, 1
    %p59 = por %p57, %p58
    %p60 = scmp.ne.s32.totalorder %s52, %s55
    %p61 = scmp.eq.s32.totalorder %s30, 0
    %p62 = por %p60, %p61
    %p63 = scmp.ne.s32.totalorder %s52, %s55
    %p64 = scmp.eq.s32.totalorder %s35, 1
    %p65 = por %p63, %p64
    %p66 = scmp.ne.s32.totalorder %s55, %s56
    %p67 = scmp.eq.s32.totalorder %s35, 0
    %p68 = por %p66, %p67
    %p69 = scmp.ne.s32.totalorder %s55, %s56
    %p70 = scmp.eq.s32.totalorder %s36, 1
    %p71 = por %p69, %p70
    %p73 = scmp.ne.s32.totalorder %s56, %s72
    %p74 = scmp.eq.s32.totalorder %s36, 0
    %p75 = por %p73, %p74
    %s76 = ssub.s32 %s37, %s49
    %s77 = ssub.s32 %s38, %s45
    %s78 = sor.u32 %s76, %s77
    %p79 = scmp.eq.s32.totalorder %s78, 0
    %s81 = sadd.s32 %s80, 1
    %s82 = scalar_select %p79, %s80, %s81
    %p85 = pneg %p79
    %p86 = scmp.eq.s32.totalorder %s30, 1
    %p87 = por %p85, %p86
    %p88 = scmp.ne.s32.totalorder %s80, %s83
    %p89 = scmp.eq.s32.totalorder %s30, 0
    %p90 = por %p88, %p89
    %p91 = scmp.ne.s32.totalorder %s80, %s83
    %p92 = scmp.eq.s32.totalorder %s35, 1
    %p93 = por %p91, %p92
    %p94 = scmp.ne.s32.totalorder %s83, %s84
    %p95 = scmp.eq.s32.totalorder %s35, 0
    %p96 = por %p94, %p95
    %p97 = scmp.ne.s32.totalorder %s83, %s84
    %p98 = scmp.eq.s32.totalorder %s36, 1
    %p99 = por %p97, %p98
    %p101 = scmp.ne.s32.totalorder %s84, %s100
    %p102 = scmp.eq.s32.totalorder %s36, 0
    %p103 = por %p101, %p102
    %s105 = sadd.s32 %s104, 1
    %p108 = scmp.eq.s32.totalorder %s30, 1
    %p109 = scmp.ne.s32.totalorder %s104, %s106
    %p110 = scmp.eq.s32.totalorder %s30, 0
    %p111 = por %p109, %p110
    %p112 = scmp.ne.s32.totalorder %s104, %s106
    %p113 = scmp.eq.s32.totalorder %s35, 1
    %p114 = por %p112, %p113
    %p115 = scmp.ne.s32.totalorder %s106, %s107
    %p116 = scmp.eq.s32.totalorder %s35, 0
    %p117 = por %p115, %p116
    %p118 = scmp.ne.s32.totalorder %s106, %s107
    %p119 = scmp.eq.s32.totalorder %s36, 1
    %p120 = por %p118, %p119
    %p122 = scmp.ne.s32.totalorder %s107, %s121
    %p123 = scmp.eq.s32.totalorder %s36, 0
    %p124 = por %p122, %p123
    %s126 = sadd.s32 %s125, 1
    %p129 = scmp.eq.s32.totalorder %s30, 1
    %p130 = scmp.ne.s32.totalorder %s125, %s127
    %p131 = scmp.eq.s32.totalorder %s30, 0
    %p132 = por %p130, %p131
    %p133 = scmp.ne.s32.totalorder %s125, %s127
    %p134 = scmp.eq.s32.totalorder %s35, 1
    %p135 = por %p133, %p134
    %p136 = scmp.ne.s32.totalorder %s127, %s128
    %p137 = scmp.eq.s32.totalorder %s35, 0
    %p138 = por %p136, %p137
    %p139 = scmp.ne.s32.totalorder %s127, %s128
    %p140 = scmp.eq.s32.totalorder %s36, 1
    %p141 = por %p139, %p140
    %p143 = scmp.ne.s32.totalorder %s128, %s142
    %p144 = scmp.eq.s32.totalorder %s36, 0
    %p145 = por %p143, %p144
    %s147 = sadd.s32 %s146, 1
    %p150 = scmp.eq.s32.totalorder %s30, 1
    %p151 = scmp.ne.s32.totalorder %s146, %s148
    %p152 = scmp.eq.s32.totalorder %s30, 0
    %p153 = por %p151, %p152
    %p154 = scmp.ne.s32.totalorder %s146, %s148
    %p155 = scmp.eq.s32.totalorder %s35, 1
    %p156 = por %p154, %p155
    %p157 = scmp.ne.s32.totalorder %s148, %s149
    %p158 = scmp.eq.s32.totalorder %s35, 0
    %p159 = por %p157, %p158
    %p160 = scmp.ne.s32.totalorder %s148, %s149
    %p161 = scmp.eq.s32.totalorder %s36, 1
    %p162 = por %p160, %p161
    %p164 = scmp.ne.s32.totalorder %s149, %s163
    %p165 = scmp.eq.s32.totalorder %s36, 0
    %p166 = por %p164, %p165
    %s168 = sadd.s32 %s167, 1
    %p171 = scmp.eq.s32.totalorder %s30, 1
    %p172 = scmp.ne.s32.totalorder %s167, %s169
    %p173 = scmp.eq.s32.totalorder %s30, 0
    %p174 = por %p172, %p173
    %p175 = scmp.ne.s32.totalorder %s167, %s169
    %p176 = scmp.eq.s32.totalorder %s35, 1
    %p177 = por %p175, %p176
    %p178 = scmp.ne.s32.totalorder %s169, %s170
    %p179 = scmp.eq.s32.totalorder %s35, 0
    %p180 = por %p178, %p179
    %p181 = scmp.ne.s32.totalorder %s169, %s170
    %p182 = scmp.eq.s32.totalorder %s36, 1
    %p183 = por %p181, %p182
    %p185 = scmp.ne.s32.totalorder %s170, %s184
    %p186 = scmp.eq.s32.totalorder %s36, 0
    %p187 = por %p185, %p186
    %s189 = sadd.s32 %s188, 1
    %p192 = scmp.eq.s32.totalorder %s30, 1
    %p193 = scmp.ne.s32.totalorder %s188, %s190
    %p194 = scmp.eq.s32.totalorder %s30, 0
    %p195 = por %p193, %p194
    %p196 = scmp.ne.s32.totalorder %s188, %s190
    %p197 = scmp.eq.s32.totalorder %s35, 1
    %p198 = por %p196, %p197
    %p199 = scmp.ne.s32.totalorder %s190, %s191
    %p200 = scmp.eq.s32.totalorder %s35, 0
    %p201 = por %p199, %p200
    %p202 = scmp.ne.s32.totalorder %s190, %s191
    %p203 = scmp.eq.s32.totalorder %s36, 1
    %p204 = por %p202, %p203
    %p206 = scmp.ne.s32.totalorder %s191, %s205
    %p207 = scmp.eq.s32.totalorder %s36, 0
    %p208 = por %p206, %p207
    %s210 = sadd.s32 %s209, 1
    %p213 = scmp.eq.s32.totalorder %s30, 1
    %p214 = scmp.ne.s32.totalorder %s209, %s211
    %p215 = scmp.eq.s32.totalorder %s30, 0
    %p216 = por %p214, %p215
    %p217 = scmp.ne.s32.totalorder %s209, %s211
    %p218 = scmp.eq.s32.totalorder %s35, 1
    %p219 = por %p217, %p218
    %p220 = scmp.ne.s32.totalorder %s211, %s212
    %p221 = scmp.eq.s32.totalorder %s35, 0
    %p222 = por %p220, %p221
    %p223 = scmp.ne.s32.totalorder %s211, %s212
    %p224 = scmp.eq.s32.totalorder %s36, 1
    %p225 = por %p223, %p224
    %p227 = scmp.ne.s32.totalorder %s212, %s226
    %p228 = scmp.eq.s32.totalorder %s36, 0
    %p229 = por %p227, %p228
    %s231 = sadd.s32 %s230, 1
    %p234 = scmp.eq.s32.totalorder %s30, 1
    %p235 = scmp.ne.s32.totalorder %s230, %s232
    %p236 = scmp.eq.s32.totalorder %s30, 0
    %p237 = por %p235, %p236
    %p238 = scmp.ne.s32.totalorder %s230, %s232
    %p239 = scmp.eq.s32.totalorder %s35, 1
    %p240 = por %p238, %p239
    %p241 = scmp.ne.s32.totalorder %s232, %s233
    %p242 = scmp.eq.s32.totalorder %s35, 0
    %p243 = por %p241, %p242
    %p244 = scmp.ne.s32.totalorder %s232, %s233
    %p245 = scmp.eq.s32.totalorder %s36, 1
    %p246 = por %p244, %p245
    %p248 = scmp.ne.s32.totalorder %s233, %s247
    %p249 = scmp.eq.s32.totalorder %s36, 0
    %p250 = por %p248, %p249
    %s252 = sadd.s32 %s251, 1
    %p255 = scmp.eq.s32.totalorder %s30, 1
    %p256 = scmp.ne.s32.totalorder %s251, %s253
    %p257 = scmp.eq.s32.totalorder %s30, 0
    %p258 = por %p256, %p257
    %p259 = scmp.ne.s32.totalorder %s251, %s253
    %p260 = scmp.eq.s32.totalorder %s35, 1
    %p261 = por %p259, %p260
    %p262 = scmp.ne.s32.totalorder %s253, %s254
    %p263 = scmp.eq.s32.totalorder %s35, 0
    %p264 = por %p262, %p263
    %p265 = scmp.ne.s32.totalorder %s253, %s254
    %p266 = scmp.eq.s32.totalorder %s36, 1
    %p267 = por %p265, %p266
    %p269 = scmp.ne.s32.totalorder %s254, %s268
    %p270 = scmp.eq.s32.totalorder %s36, 0
    %p271 = por %p269, %p270
    %s273 = sadd.s32 %s272, 1
    %p276 = scmp.eq.s32.totalorder %s30, 1
    %p277 = scmp.ne.s32.totalorder %s272, %s274
    %p278 = scmp.eq.s32.totalorder %s30, 0
    %p279 = por %p277, %p278
    %p280 = scmp.ne.s32.totalorder %s272, %s274
    %p281 = scmp.eq.s32.totalorder %s35, 1
    %p282 = por %p280, %p281
    %p283 = scmp.ne.s32.totalorder %s274, %s275
    %p284 = scmp.eq.s32.totalorder %s35, 0
    %p285 = por %p283, %p284
    %p286 = scmp.ne.s32.totalorder %s274, %s275
    %p287 = scmp.eq.s32.totalorder %s36, 1
    %p288 = por %p286, %p287
    %p290 = scmp.ne.s32.totalorder %s275, %s289
    %p291 = scmp.eq.s32.totalorder %s36, 0
    %p292 = por %p290, %p291
    %s294 = sadd.s32 %s293, 1
    %p297 = scmp.eq.s32.totalorder %s30, 1
    %p298 = scmp.ne.s32.totalorder %s293, %s295
    %p299 = scmp.eq.s32.totalorder %s30, 0
    %p300 = por %p298, %p299
    %p301 = scmp.ne.s32.totalorder %s293, %s295
    %p302 = scmp.eq.s32.totalorder %s35, 1
    %p303 = por %p301, %p302
    %p304 = scmp.ne.s32.totalorder %s295, %s296
    %p305 = scmp.eq.s32.totalorder %s35, 0
    %p306 = por %p304, %p305
    %p307 = scmp.ne.s32.totalorder %s295, %s296
    %p308 = scmp.eq.s32.totalorder %s36, 1
    %p309 = por %p307, %p308
    %p311 = scmp.ne.s32.totalorder %s296, %s310
    %p312 = scmp.eq.s32.totalorder %s36, 0
    %p313 = por %p311, %p312
    %s315 = sadd.s32 %s314, 1
    %p318 = scmp.eq.s32.totalorder %s30, 1
    %p319 = scmp.ne.s32.totalorder %s314, %s316
    %p320 = scmp.eq.s32.totalorder %s30, 0
    %p321 = por %p319, %p320
    %p322 = scmp.ne.s32.totalorder %s314, %s316
    %p323 = scmp.eq.s32.totalorder %s35, 1
    %p324 = por %p322, %p323
    %p325 = scmp.ne.s32.totalorder %s316, %s317
    %p326 = scmp.eq.s32.totalorder %s35, 0
    %p327 = por %p325, %p326
    %p328 = scmp.ne.s32.totalorder %s316, %s317
    %p329 = scmp.eq.s32.totalorder %s36, 1
    %p330 = por %p328, %p329
    %p332 = scmp.ne.s32.totalorder %s317, %s331
    %p333 = scmp.eq.s32.totalorder %s36, 0
    %p334 = por %p332, %p333
    %s336 = sadd.s32 %s335, 1
    %p339 = scmp.eq.s32.totalorder %s30, 1
    %p340 = scmp.ne.s32.totalorder %s335, %s337
    %p341 = scmp.eq.s32.totalorder %s30, 0
    %p342 = por %p340, %p341
    %p343 = scmp.ne.s32.totalorder %s335, %s337
    %p344 = scmp.eq.s32.totalorder %s35, 1
    %p345 = por %p343, %p344
    %p346 = scmp.ne.s32.totalorder %s337, %s338
    %p347 = scmp.eq.s32.totalorder %s35, 0
    %p348 = por %p346, %p347
    %p349 = scmp.ne.s32.totalorder %s337, %s338
    %p350 = scmp.eq.s32.totalorder %s36, 1
    %p351 = por %p349, %p350
    %p353 = scmp.ne.s32.totalorder %s338, %s352
    %p354 = scmp.eq.s32.totalorder %s36, 0
    %p355 = por %p353, %p354
    %s357 = sadd.s32 %s356, 1
    %p360 = scmp.eq.s32.totalorder %s30, 1
    %p361 = scmp.ne.s32.totalorder %s356, %s358
    %p362 = scmp.eq.s32.totalorder %s30, 0
    %p363 = por %p361, %p362
    %p364 = scmp.ne.s32.totalorder %s356, %s358
    %p365 = scmp.eq.s32.totalorder %s35, 1
    %p366 = por %p364, %p365
    %p367 = scmp.ne.s32.totalorder %s358, %s359
    %p368 = scmp.eq.s32.totalorder %s35, 0
    %p369 = por %p367, %p368
    %p370 = scmp.ne.s32.totalorder %s358, %s359
    %p371 = scmp.eq.s32.totalorder %s36, 1
    %p372 = por %p370, %p371
    %p374 = scmp.ne.s32.totalorder %s359, %s373
    %p375 = scmp.eq.s32.totalorder %s36, 0
    %p376 = por %p374, %p375
    %s378 = sadd.s32 %s377, 1
    %p381 = scmp.eq.s32.totalorder %s30, 1
    %p382 = scmp.ne.s32.totalorder %s377, %s379
    %p383 = scmp.eq.s32.totalorder %s30, 0
    %p384 = por %p382, %p383
    %p385 = scmp.ne.s32.totalorder %s377, %s379
    %p386 = scmp.eq.s32.totalorder %s35, 1
    %p387 = por %p385, %p386
    %p388 = scmp.ne.s32.totalorder %s379, %s380
    %p389 = scmp.eq.s32.totalorder %s35, 0
    %p390 = por %p388, %p389
    %p391 = scmp.ne.s32.totalorder %s379, %s380
    %p392 = scmp.eq.s32.totalorder %s36, 1
    %p393 = por %p391, %p392
    %p395 = scmp.ne.s32.totalorder %s380, %s394
    %p396 = scmp.eq.s32.totalorder %s36, 0
    %p397 = por %p395, %p396
    %s398 = ssub.s32 %s37, %s49
    %s399 = ssub.s32 %s38, %s45
    %s400 = sor.u32 %s398, %s399
    %p401 = scmp.eq.s32.totalorder %s400, 0
    %s403 = sadd.s32 %s402, 1
    %s404 = scalar_select %p401, %s402, %s403
    %p407 = pneg %p401
    %p408 = scmp.eq.s32.totalorder %s30, 1
    %p409 = por %p407, %p408
    %p410 = scmp.ne.s32.totalorder %s402, %s405
    %p411 = scmp.eq.s32.totalorder %s30, 0
    %p412 = por %p410, %p411
    %p413 = scmp.ne.s32.totalorder %s402, %s405
    %p414 = scmp.eq.s32.totalorder %s35, 1
    %p415 = por %p413, %p414
    %p416 = scmp.ne.s32.totalorder %s405, %s406
    %p417 = scmp.eq.s32.totalorder %s35, 0
    %p418 = por %p416, %p417
    %p419 = scmp.ne.s32.totalorder %s405, %s406
    %p420 = scmp.eq.s32.totalorder %s36, 1
    %p421 = por %p419, %p420
    %p423 = scmp.ne.s32.totalorder %s406, %s422
    %p424 = scmp.eq.s32.totalorder %s36, 0
    %p425 = por %p423, %p424
    %s426 = ssub.s32 %s37, %s49
    %s427 = ssub.s32 %s38, %s45
    %s428 = sor.u32 %s426, %s427
    %p429 = scmp.eq.s32.totalorder %s428, 0
    %s431 = sadd.s32 %s430, 1
    %s432 = scalar_select %p429, %s430, %s431
    %p435 = pneg %p429
    %p436 = scmp.eq.s32.totalorder %s30, 1
    %p437 = por %p435, %p436
    %p438 = scmp.ne.s32.totalorder %s430, %s433
    %p439 = scmp.eq.s32.totalorder %s30, 0
    %p440 = por %p438, %p439
    %p441 = scmp.ne.s32.totalorder %s430, %s433
    %p442 = scmp.eq.s32.totalorder %s35, 1
    %p443 = por %p441, %p442
    %p444 = scmp.ne.s32.totalorder %s433, %s434
    %p445 = scmp.eq.s32.totalorder %s35, 0
    %p446 = por %p444, %p445
    %p447 = scmp.ne.s32.totalorder %s433, %s434
    %p448 = scmp.eq.s32.totalorder %s36, 1
    %p449 = por %p447, %p448
    %p451 = scmp.ne.s32.totalorder %s434, %s450
    %p452 = scmp.eq.s32.totalorder %s36, 0
    %p453 = por %p451, %p452
    %p454 = scmp.le.s32.totalorder 1, %s30
    %p455 = scmp.lt.s32.totalorder %s30, 3
    %p456 = pnand %p454, %p455
    %p457 = pneg %p456
    // Predicated region
    $region9: #{tz_regressor_forward.1} parent=5 // pred_check
      _
    $region10: #{tz_regressor_forward.1} parent=5 // pred_check_branch
      %459 = sbr.rel (%p456) target = $region12
    $region11: #{tz_regressor_forward.1} parent=5 // pred_region
      %s460 = ssub.s32 %s30, 1
      // Predicated region
      $region13: #{tz_regressor_forward.1} parent=11 // pred_check
        %p461 = pneg %p117
      $region14: #{tz_regressor_forward.1} parent=11 // pred_check_branch
        %463 = sbr.rel (%p461) target = $region16
      $region15: #{tz_regressor_forward.1} parent=11 // pred_region
        _
      $region16: #{tz_regressor_forward.1} parent=11 // pred_fallthru
        _
      // Predicated region
      $region17: #{tz_regressor_forward.1} parent=11 // pred_check
        %p464 = pneg %p138
      $region18: #{tz_regressor_forward.1} parent=11 // pred_check_branch
        %466 = sbr.rel (%p464) target = $region20
      $region19: #{tz_regressor_forward.1} parent=11 // pred_region
        _
      $region20: #{tz_regressor_forward.1} parent=11 // pred_fallthru
        _
      // Predicated region
      $region21: #{tz_regressor_forward.1} parent=11 // pred_check
        %p467 = pneg %p159
      $region22: #{tz_regressor_forward.1} parent=11 // pred_check_branch
        %469 = sbr.rel (%p467) target = $region24
      $region23: #{tz_regressor_forward.1} parent=11 // pred_region
        _
      $region24: #{tz_regressor_forward.1} parent=11 // pred_fallthru
        _
      // Predicated region
      $region25: #{tz_regressor_forward.1} parent=11 // pred_check
        %p470 = pneg %p180
      $region26: #{tz_regressor_forward.1} parent=11 // pred_check_branch
        %472 = sbr.rel (%p470) target = $region28
      $region27: #{tz_regressor_forward.1} parent=11 // pred_region
        _
      $region28: #{tz_regressor_forward.1} parent=11 // pred_fallthru
        _
      // Predicated region
      $region29: #{tz_regressor_forward.1} parent=11 // pred_check
        %p473 = pneg %p201
      $region30: #{tz_regressor_forward.1} parent=11 // pred_check_branch
        %475 = sbr.rel (%p473) target = $region32
      $region31: #{tz_regressor_forward.1} parent=11 // pred_region
        _
      $region32: #{tz_regressor_forward.1} parent=11 // pred_fallthru
        _
      // Predicated region
      $region33: #{tz_regressor_forward.1} parent=11 // pred_check
        %p476 = pneg %p222
      $region34: #{tz_regressor_forward.1} parent=11 // pred_check_branch
        %478 = sbr.rel (%p476) target = $region36
      $region35: #{tz_regressor_forward.1} parent=11 // pred_region
        _
      $region36: #{tz_regressor_forward.1} parent=11 // pred_fallthru
        _
      // Predicated region
      $region37: #{tz_regressor_forward.1} parent=11 // pred_check
        %p479 = pneg %p243
      $region38: #{tz_regressor_forward.1} parent=11 // pred_check_branch
        %481 = sbr.rel (%p479) target = $region40
      $region39: #{tz_regressor_forward.1} parent=11 // pred_region
        _
      $region40: #{tz_regressor_forward.1} parent=11 // pred_fallthru
        _
      // Predicated region
      $region41: #{tz_regressor_forward.1} parent=11 // pred_check
        %p482 = pneg %p264
      $region42: #{tz_regressor_forward.1} parent=11 // pred_check_branch
        %484 = sbr.rel (%p482) target = $region44
      $region43: #{tz_regressor_forward.1} parent=11 // pred_region
        _
      $region44: #{tz_regressor_forward.1} parent=11 // pred_fallthru
        _
      // Predicated region
      $region45: #{tz_regressor_forward.1} parent=11 // pred_check
        %p485 = pneg %p285
      $region46: #{tz_regressor_forward.1} parent=11 // pred_check_branch
        %487 = sbr.rel (%p485) target = $region48
      $region47: #{tz_regressor_forward.1} parent=11 // pred_region
        _
      $region48: #{tz_regressor_forward.1} parent=11 // pred_fallthru
        _
      // Predicated region
      $region49: #{tz_regressor_forward.1} parent=11 // pred_check
        %p488 = pneg %p306
      $region50: #{tz_regressor_forward.1} parent=11 // pred_check_branch
        %490 = sbr.rel (%p488) target = $region52
      $region51: #{tz_regressor_forward.1} parent=11 // pred_region
        _
      $region52: #{tz_regressor_forward.1} parent=11 // pred_fallthru
        _
      // Predicated region
      $region53: #{tz_regressor_forward.1} parent=11 // pred_check
        %p491 = pneg %p327
      $region54: #{tz_regressor_forward.1} parent=11 // pred_check_branch
        %493 = sbr.rel (%p491) target = $region56
      $region55: #{tz_regressor_forward.1} parent=11 // pred_region
        _
      $region56: #{tz_regressor_forward.1} parent=11 // pred_fallthru
        _
      // Predicated region
      $region57: #{tz_regressor_forward.1} parent=11 // pred_check
        %p494 = pneg %p348
      $region58: #{tz_regressor_forward.1} parent=11 // pred_check_branch
        %496 = sbr.rel (%p494) target = $region60
      $region59: #{tz_regressor_forward.1} parent=11 // pred_region
        _
      $region60: #{tz_regressor_forward.1} parent=11 // pred_fallthru
        _
      // Predicated region
      $region61: #{tz_regressor_forward.1} parent=11 // pred_check
        %p497 = pneg %p369
      $region62: #{tz_regressor_forward.1} parent=11 // pred_check_branch
        %499 = sbr.rel (%p497) target = $region64
      $region63: #{tz_regressor_forward.1} parent=11 // pred_region
        _
      $region64: #{tz_regressor_forward.1} parent=11 // pred_fallthru
        _
      // Predicated region
      $region65: #{tz_regressor_forward.1} parent=11 // pred_check
        %p500 = pneg %p390
      $region66: #{tz_regressor_forward.1} parent=11 // pred_check_branch
        %502 = sbr.rel (%p500) target = $region68
      $region67: #{tz_regressor_forward.1} parent=11 // pred_region
        _
      $region68: #{tz_regressor_forward.1} parent=11 // pred_fallthru
        _
    $region12: #{tz_regressor_forward.1} parent=5 // pred_fallthru
      _
    %p503 = scmp.lt.s32.totalorder %s30, 2
    // Predicated region
    $region69: #{tz_regressor_forward.1} parent=5 // pred_check
      %p504 = pneg %p503
    $region70: #{tz_regressor_forward.1} parent=5 // pred_check_branch
      %506 = sbr.rel (%p504) target = $region72
    $region71: #{tz_regressor_forward.1} parent=5 // pred_region
      // Predicated region
      $region73: #{tz_regressor_forward.1} parent=71 // pred_check
        %p507 = pneg %p62
      $region74: #{tz_regressor_forward.1} parent=71 // pred_check_branch
        %509 = sbr.rel (%p507) target = $region76
      $region75: #{tz_regressor_forward.1} parent=71 // pred_region
        %p510 = scmp.lt.s32.totalorder %s37, 1
        %s511 = scalar_select %p510, %s37, 1
        %s512 = scalar_lea.vmem %s0, %s511
      $region76: #{tz_regressor_forward.1} parent=71 // pred_fallthru
        _
      // Predicated region
      $region77: #{tz_regressor_forward.1} parent=71 // pred_check
        %p513 = pneg %p90
      $region78: #{tz_regressor_forward.1} parent=71 // pred_check_branch
        %515 = sbr.rel (%p513) target = $region80
      $region79: #{tz_regressor_forward.1} parent=71 // pred_region
        %p516 = scmp.lt.s32.totalorder %s37, 1
        %s517 = scalar_select %p516, %s37, 1
        %p518 = scmp.lt.s32.totalorder %s38, 0
        %s519 = scalar_select %p518, %s38, 0
        %s520 = sadd.s32 %s519, %s517
        %s521 = smul.addr %s520, 8
        %s522 = scalar_lea.vmem %s1, %s521
      $region80: #{tz_regressor_forward.1} parent=71 // pred_fallthru
        _
    $region72: #{tz_regressor_forward.1} parent=5 // pred_fallthru
      _
    %p523 = scmp.le.s32.totalorder 1, %s30
    %p524 = scmp.lt.s32.totalorder %s30, 3
    %p525 = pnand %p523, %p524
    %p526 = pneg %p525
    // Predicated region
    $region81: #{tz_regressor_forward.1} parent=5 // pred_check
      _
    $region82: #{tz_regressor_forward.1} parent=5 // pred_check_branch
      %528 = sbr.rel (%p525) target = $region84
    $region83: #{tz_regressor_forward.1} parent=5 // pred_region
      %s529 = ssub.s32 %s30, 1
      %p530 = scmp.lt.s32.totalorder %s39, 1
      %s531 = scalar_select %p530, %s39, 1
      %s532 = scalar_lea.vmem %s0, %s531
      %p533 = pneg %p68
      %p534 = pneg %p65
      %p535 = scmp.lt.s32.totalorder %s39, 1
      %s536 = scalar_select %p535, %s39, 1
      %p537 = scmp.lt.s32.totalorder %s40, 0
      %s538 = scalar_select %p537, %s40, 0
      %s539 = sadd.s32 %s538, %s536
      %s540 = smul.addr %s539, 8
      %s541 = scalar_lea.vmem %s1, %s540
      %p542 = pneg %p96
      %p543 = pneg %p93
      %p544 = pneg %p117
      %p545 = pneg %p114
      %p546 = pneg %p138
      %p547 = pneg %p135
      %p548 = pneg %p159
      %p549 = pneg %p156
      %p550 = pneg %p180
      %p551 = pneg %p177
      %p552 = pneg %p201
      %p553 = pneg %p198
      %p554 = pneg %p222
      %p555 = pneg %p219
      %p556 = pneg %p243
      %p557 = pneg %p240
      %p558 = pneg %p264
      %p559 = pneg %p261
      %p560 = pneg %p285
      %p561 = pneg %p282
      %p562 = pneg %p306
      %p563 = pneg %p303
      %p564 = pneg %p327
      %p565 = pneg %p324
      %p566 = pneg %p348
      %p567 = pneg %p345
      %p568 = pneg %p369
      %p569 = pneg %p366
      %p570 = pneg %p390
      %p571 = pneg %p387
      %p572 = pneg %p418
      %p573 = pneg %p415
      %p574 = scmp.lt.s32.totalorder %s39, 1
      %s575 = scalar_select %p574, %s39, 1
      %p576 = scmp.lt.s32.totalorder %s40, 0
      %s577 = scalar_select %p576, %s40, 0
      %s578 = sadd.s32 %s577, %s575
      %s579 = smul.addr %s578, 8
      %s580 = scalar_lea.vmem %s16, %s579
      %p581 = pneg %p446
      %p582 = pneg %p443
      %p583 = scmp.lt.s32.totalorder %s39, 1
      %s584 = scalar_select %p583, %s39, 1
      %p585 = scmp.lt.s32.totalorder %s40, 0
      %s586 = scalar_select %p585, %s40, 0
      %s587 = sadd.s32 %s586, %s584
      %s588 = smul.addr %s587, 8
      %s589 = scalar_lea.vmem %s17, %s588
      %p590 = scmp.lt.s32.totalorder %s39, 1
      %s591 = scalar_select %p590, %s39, 1
      %s592 = scalar_lea.vmem %s0, %s591
      %p593 = scmp.lt.s32.totalorder %s39, 1
      %s594 = scalar_select %p593, %s39, 1
      %p595 = scmp.lt.s32.totalorder %s40, 0
      %s596 = scalar_select %p595, %s40, 0
      %s597 = sadd.s32 %s596, %s594
      %s598 = smul.addr %s597, 8
      %s599 = scalar_lea.vmem %s1, %s598
      %p600 = scmp.lt.s32.totalorder %s39, 1
      %s601 = scalar_select %p600, %s39, 1
      %p602 = scmp.lt.s32.totalorder %s40, 0
      %s603 = scalar_select %p602, %s40, 0
      %s604 = sadd.s32 %s603, %s601
      %s605 = smul.addr %s604, 8
      %s606 = scalar_lea.vmem %s16, %s605
      %p607 = scmp.lt.s32.totalorder %s39, 1
      %s608 = scalar_select %p607, %s39, 1
      %p609 = scmp.lt.s32.totalorder %s40, 0
      %s610 = scalar_select %p609, %s40, 0
      %s611 = sadd.s32 %s610, %s608
      %s612 = smul.addr %s611, 8
      %s613 = scalar_lea.vmem %s17, %s612
      %v614 = vld [vmem:[%s592] sm:$0x1]
      %v615 = vld [vmem:[%s599] sm:$0xff]
      %v616 = vld [vmem:[%s2] sm:$0x3f]
      %v617 = vld [vmem:[%s3] sm:$0x1]
      %vm618 = vcmask 48128
      %v620 = vsel %vm618, %v614, 0
      %vm622 = vcmask 1045504
      %v624 = vsel %vm622, %v616, 0
      %626 = vmatprep.subr.mxu0 0.0
      %627 = vmatpush1.msra.mxu0 %v624
      %628 = vmatprep.subr.mxu0 0.0
      %629 = vmatpush1.msra.mxu0 0.0
      %630 = vmatprep.subr.mxu0 0.0
      %631 = vmatpush1.msra.mxu0 0.0
      %632 = vmatprep.subr.mxu0 0.0
      %633 = vmatpush1.msra.mxu0 0.0
      %634 = vmatprep.subr.mxu0 0.0
      %635 = vmatpush1.msra.mxu0 0.0
      %636 = vmatprep.subr.mxu0 0.0
      %637 = vmatpush1.msra.mxu0 0.0
      %638 = vmatprep.subr.mxu0 0.0
      %639 = vmatpush1.msra.mxu0 0.0
      %640 = vmatprep.subr.mxu0 0.0
      %641 = vmatpush1.msra.mxu0 0.0
      %642 = vmatprep.subr.mxu0 0.0
      %643 = vmatpush1.msra.mxu0 0.0
      %644 = vmatprep.subr.mxu0 0.0
      %645 = vmatpush1.msra.mxu0 0.0
      %646 = vmatprep.subr.mxu0 0.0
      %647 = vmatpush1.msra.mxu0 0.0
      %648 = vmatprep.subr.mxu0 0.0
      %649 = vmatpush1.msra.mxu0 0.0
      %650 = vmatprep.subr.mxu0 0.0
      %651 = vmatpush1.msra.mxu0 0.0
      %652 = vmatprep.subr.mxu0 0.0
      %653 = vmatpush1.msra.mxu0 0.0
      %654 = vmatprep.subr.mxu0 0.0
      %655 = vmatpush1.msra.mxu0 0.0
      %656 = vmatprep.subr.mxu0 0.0
      %657 = vmatpush1.msra.mxu0 0.0
      %658 = vmatprep.subr.mxu0 0.0
      %659 = vmatpush1.msra.mxu0 0.0
      %660 = vmatprep.subr.mxu0 0.0
      %661 = vmatpush1.msra.mxu0 0.0
      %662 = vmatprep.subr.mxu0 0.0
      %663 = vmatpush1.msra.mxu0 0.0
      %664 = vmatprep.subr.mxu0 0.0
      %665 = vmatpush1.msra.mxu0 0.0
      %666 = vmatprep.subr.mxu0 0.0
      %667 = vmatpush1.msra.mxu0 0.0
      %668 = vmatprep.subr.mxu0 0.0
      %669 = vmatpush1.msra.mxu0 0.0
      %670 = vmatprep.subr.mxu0 0.0
      %671 = vmatpush1.msra.mxu0 0.0
      %672 = vmatprep.subr.mxu0 0.0
      %673 = vmatpush1.msra.mxu0 0.0
      %674 = vmatprep.subr.mxu0 0.0
      %675 = vmatpush1.msra.mxu0 0.0
      %676 = vmatprep.subr.mxu0 0.0
      %677 = vmatpush1.msra.mxu0 0.0
      %678 = vmatprep.subr.mxu0 0.0
      %679 = vmatpush1.msra.mxu0 0.0
      %680 = vmatprep.subr.mxu0 0.0
      %681 = vmatpush1.msra.mxu0 0.0
      %682 = vmatprep.subr.mxu0 0.0
      %683 = vmatpush1.msra.mxu0 0.0
      %684 = vmatprep.subr.mxu0 0.0
      %685 = vmatpush1.msra.mxu0 0.0
      %686 = vmatprep.subr.mxu0 0.0
      %687 = vmatpush1.msra.mxu0 0.0
      %688 = vmatprep.subr.mxu0 0.0
      %689 = vmatpush1.msra.mxu0 0.0
      %690 = vmatprep.mubr.f32.mxu0 0.0
      %691 = vmatmul.mubr.f32.gmra.mrb[0].mxu0 %v620
      %v692 = vpop.f32.mrb[0].mxu0
      %v693 = vadd.f32 %v617, %v692
      %v694 = vpop.f32.mrb[0].mxu0
      %695 = vdwg.mxu0
      %v696 = vmax.f32 %v693, 0.0
      %v697 = vld [vmem:[%s4] sm:$0x1]
      %v698 = vmul.f32 %v696, %v697
      %vm699 = vcmask 253952
      %v700 = vsel %vm699, %v698, 0.0
      %701 = vadd.xlane.f32.xlu0 %v700
      %v702 = vpop.xlane.xlu0 %701
      %v703 = vld [vmem:[#allocation2] sm:$0x1]
      %v704 = vadd.f32 %v702, %v703
      %v705 = vld [vmem:[%s6] sm:$0xf]
      %v706 = vld [vmem:[%s7] sm:$0x1]
      %708 = vset.pattern.permute.xlu0 0
      %709 = vperm.xlu0 %708, %v704
      %v710 = vpop.permute.xlu0 %709
      %v712 = vmul.f32 %v710, %v706
      %v713 = vlaneseq
      %v714 = vshrl.u32 %v713, 7
      %v715 = vsub.s32 0, %v714
      %v716 = vrot.slane %v712, %v715
      %vm717 = vcmask 31744
      %v719 = vsel %vm717, %v615, 0
      %vm721 = vcmask 1043456
      %v723 = vsel %vm721, %v705, 0
      %725 = vmatprep.subr.mxu0 0.0
      %726 = vmatpush1.msra.mxu0 %v723
      %727 = vmatprep.subr.mxu0 0.0
      %728 = vmatpush1.msra.mxu0 0.0
      %729 = vmatprep.subr.mxu0 0.0
      %730 = vmatpush1.msra.mxu0 0.0
      %731 = vmatprep.subr.mxu0 0.0
      %732 = vmatpush1.msra.mxu0 0.0
      %733 = vmatprep.subr.mxu0 0.0
      %734 = vmatpush1.msra.mxu0 0.0
      %735 = vmatprep.subr.mxu0 0.0
      %736 = vmatpush1.msra.mxu0 0.0
      %737 = vmatprep.subr.mxu0 0.0
      %738 = vmatpush1.msra.mxu0 0.0
      %739 = vmatprep.subr.mxu0 0.0
      %740 = vmatpush1.msra.mxu0 0.0
      %741 = vmatprep.subr.mxu0 0.0
      %742 = vmatpush1.msra.mxu0 0.0
      %743 = vmatprep.subr.mxu0 0.0
      %744 = vmatpush1.msra.mxu0 0.0
      %745 = vmatprep.subr.mxu0 0.0
      %746 = vmatpush1.msra.mxu0 0.0
      %747 = vmatprep.subr.mxu0 0.0
      %748 = vmatpush1.msra.mxu0 0.0
      %749 = vmatprep.subr.mxu0 0.0
      %750 = vmatpush1.msra.mxu0 0.0
      %751 = vmatprep.subr.mxu0 0.0
      %752 = vmatpush1.msra.mxu0 0.0
      %753 = vmatprep.subr.mxu0 0.0
      %754 = vmatpush1.msra.mxu0 0.0
      %755 = vmatprep.subr.mxu0 0.0
      %756 = vmatpush1.msra.mxu0 0.0
      %757 = vmatprep.subr.mxu0 0.0
      %758 = vmatpush1.msra.mxu0 0.0
      %759 = vmatprep.subr.mxu0 0.0
      %760 = vmatpush1.msra.mxu0 0.0
      %761 = vmatprep.subr.mxu0 0.0
      %762 = vmatpush1.msra.mxu0 0.0
      %763 = vmatprep.subr.mxu0 0.0
      %764 = vmatpush1.msra.mxu0 0.0
      %765 = vmatprep.subr.mxu0 0.0
      %766 = vmatpush1.msra.mxu0 0.0
      %767 = vmatprep.subr.mxu0 0.0
      %768 = vmatpush1.msra.mxu0 0.0
      %769 = vmatprep.subr.mxu0 0.0
      %770 = vmatpush1.msra.mxu0 0.0
      %771 = vmatprep.subr.mxu0 0.0
      %772 = vmatpush1.msra.mxu0 0.0
      %773 = vmatprep.subr.mxu0 0.0
      %774 = vmatpush1.msra.mxu0 0.0
      %775 = vmatprep.subr.mxu0 0.0
      %776 = vmatpush1.msra.mxu0 0.0
      %777 = vmatprep.subr.mxu0 0.0
      %778 = vmatpush1.msra.mxu0 0.0
      %779 = vmatprep.subr.mxu0 0.0
      %780 = vmatpush1.msra.mxu0 0.0
      %781 = vmatprep.subr.mxu0 0.0
      %782 = vmatpush1.msra.mxu0 0.0
      %783 = vmatprep.subr.mxu0 0.0
      %784 = vmatpush1.msra.mxu0 0.0
      %785 = vmatprep.subr.mxu0 0.0
      %786 = vmatpush1.msra.mxu0 0.0
      %787 = vmatprep.subr.mxu0 0.0
      %788 = vmatpush1.msra.mxu0 0.0
      %789 = vmatprep.mubr.f32.mxu0 0.0
      %790 = vmatmul.mubr.f32.gmra.mrb[0].mxu0 %v719
      %v791 = vpop.f32.mrb[0].mxu0
      %v792 = vadd.f32 %v716, %v791
      %v793 = vpop.f32.mrb[0].mxu0
      %794 = vdwg.mxu0
      %v795 = vld [vmem:[%s8] sm:$0x1]
      %v797 = vlaneseq
      %v798 = vshrl.u32 %v797, 7
      %v799 = vsub.s32 0, %v798
      %v800 = vrot.slane %v795, %v799
      %v802 = vadd.f32 %v792, %v800
      %v803 = vmax.f32 %v802, 0.0
      %v804 = vld [vmem:[%s9] sm:$0x1]
      %v806 = vlaneseq
      %v807 = vshrl.u32 %v806, 7
      %v808 = vsub.s32 0, %v807
      %v809 = vrot.slane %v804, %v808
      %v811 = vmul.f32 %v803, %v809
      %vm812 = vcmask 261120
      %v813 = vsel %vm812, %v811, 0.0
      %814 = vadd.xlane.f32.xlu0 %v813
      %v815 = vpop.xlane.xlu0 %814
      %v816 = vld [vmem:[#allocation3] sm:$0x1]
      %v818 = vlaneseq
      %v819 = vshrl.u32 %v818, 7
      %v820 = vsub.s32 0, %v819
      %v821 = vrot.slane %v816, %v820
      %v823 = vadd.f32 %v815, %v821
      %v824 = vld [vmem:[%s11] sm:$0xf]
      %v825 = vld [vmem:[%s12] sm:$0x1]
      %827 = vset.pattern.permute.xlu0 0
      %828 = vperm.xlu0 %827, %v823
      %v829 = vpop.permute.xlu0 %828
      %v832 = vlaneseq
      %v833 = vshrl.u32 %v832, 7
      %v834 = vsub.s32 0, %v833
      %v835 = vrot.slane %v825, %v834
      %v837 = vmul.f32 %v829, %v835
      %v839 = vsel %vm721, %v824, 0
      %841 = vmatprep.subr.mxu0 0.0
      %842 = vmatpush1.msra.mxu0 %v839
      %843 = vmatprep.subr.mxu0 0.0
      %844 = vmatpush1.msra.mxu0 0.0
      %845 = vmatprep.subr.mxu0 0.0
      %846 = vmatpush1.msra.mxu0 0.0
      %847 = vmatprep.subr.mxu0 0.0
      %848 = vmatpush1.msra.mxu0 0.0
      %849 = vmatprep.subr.mxu0 0.0
      %850 = vmatpush1.msra.mxu0 0.0
      %851 = vmatprep.subr.mxu0 0.0
      %852 = vmatpush1.msra.mxu0 0.0
      %853 = vmatprep.subr.mxu0 0.0
      %854 = vmatpush1.msra.mxu0 0.0
      %855 = vmatprep.subr.mxu0 0.0
      %856 = vmatpush1.msra.mxu0 0.0
      %857 = vmatprep.subr.mxu0 0.0
      %858 = vmatpush1.msra.mxu0 0.0
      %859 = vmatprep.subr.mxu0 0.0
      %860 = vmatpush1.msra.mxu0 0.0
      %861 = vmatprep.subr.mxu0 0.0
      %862 = vmatpush1.msra.mxu0 0.0
      %863 = vmatprep.subr.mxu0 0.0
      %864 = vmatpush1.msra.mxu0 0.0
      %865 = vmatprep.subr.mxu0 0.0
      %866 = vmatpush1.msra.mxu0 0.0
      %867 = vmatprep.subr.mxu0 0.0
      %868 = vmatpush1.msra.mxu0 0.0
      %869 = vmatprep.subr.mxu0 0.0
      %870 = vmatpush1.msra.mxu0 0.0
      %871 = vmatprep.subr.mxu0 0.0
      %872 = vmatpush1.msra.mxu0 0.0
      %873 = vmatprep.subr.mxu0 0.0
      %874 = vmatpush1.msra.mxu0 0.0
      %875 = vmatprep.subr.mxu0 0.0
      %876 = vmatpush1.msra.mxu0 0.0
      %877 = vmatprep.subr.mxu0 0.0
      %878 = vmatpush1.msra.mxu0 0.0
      %879 = vmatprep.subr.mxu0 0.0
      %880 = vmatpush1.msra.mxu0 0.0
      %881 = vmatprep.subr.mxu0 0.0
      %882 = vmatpush1.msra.mxu0 0.0
      %883 = vmatprep.subr.mxu0 0.0
      %884 = vmatpush1.msra.mxu0 0.0
      %885 = vmatprep.subr.mxu0 0.0
      %886 = vmatpush1.msra.mxu0 0.0
      %887 = vmatprep.subr.mxu0 0.0
      %888 = vmatpush1.msra.mxu0 0.0
      %889 = vmatprep.subr.mxu0 0.0
      %890 = vmatpush1.msra.mxu0 0.0
      %891 = vmatprep.subr.mxu0 0.0
      %892 = vmatpush1.msra.mxu0 0.0
      %893 = vmatprep.subr.mxu0 0.0
      %894 = vmatpush1.msra.mxu0 0.0
      %895 = vmatprep.subr.mxu0 0.0
      %896 = vmatpush1.msra.mxu0 0.0
      %897 = vmatprep.subr.mxu0 0.0
      %898 = vmatpush1.msra.mxu0 0.0
      %899 = vmatprep.subr.mxu0 0.0
      %900 = vmatpush1.msra.mxu0 0.0
      %901 = vmatprep.subr.mxu0 0.0
      %902 = vmatpush1.msra.mxu0 0.0
      %903 = vmatprep.subr.mxu0 0.0
      %904 = vmatpush1.msra.mxu0 0.0
      %905 = vmatprep.mubr.f32.mxu0 0.0
      %906 = vmatmul.mubr.f32.gmra.mrb[0].mxu0 %v719
      %v907 = vpop.f32.mrb[0].mxu0
      %v908 = vadd.f32 %v837, %v907
      %v909 = vpop.f32.mrb[0].mxu0
      %910 = vdwg.mxu0
      %v911 = vld [vmem:[%s13] sm:$0x1]
      %v913 = vlaneseq
      %v914 = vshrl.u32 %v913, 7
      %v915 = vsub.s32 0, %v914
      %v916 = vrot.slane %v911, %v915
      %v918 = vadd.f32 %v908, %v916
      %v919 = vmax.f32 %v918, 0.0
      %v920 = vld [vmem:[%s14] sm:$0x1]
      %v922 = vlaneseq
      %v923 = vshrl.u32 %v922, 7
      %v924 = vsub.s32 0, %v923
      %v925 = vrot.slane %v920, %v924
      %v927 = vmul.f32 %v919, %v925
      %v928 = vsel %vm812, %v927, 0.0
      %929 = vadd.xlane.f32.xlu0 %v928
      %v930 = vpop.xlane.xlu0 %929
      %v931 = vld [vmem:[#allocation4] sm:$0x1]
      %v933 = vlaneseq
      %v934 = vshrl.u32 %v933, 7
      %v935 = vsub.s32 0, %v934
      %v936 = vrot.slane %v931, %v935
      %v938 = vadd.f32 %v930, %v936
      %vm939 = vcmask 7168
      %940 = vst.msk [vmem:[%s613] sm:$0xff] %vm939, %v823
      %941 = vst.msk [vmem:[%s606] sm:$0xff] %vm939, %v938
      %p942 = scmp.lt.s32.totalorder %s39, 1
      %s943 = scalar_select %p942, %s39, 1
      %p944 = scmp.lt.s32.totalorder %s40, 0
      %s945 = scalar_select %p944, %s40, 0
      %s946 = sadd.s32 %s945, %s943
      %s947 = smul.addr %s946, 8
      %s948 = scalar_lea.vmem %s16, %s947
      %p949 = scmp.lt.s32.totalorder %s39, 1
      %s950 = scalar_select %p949, %s39, 1
      %p951 = scmp.lt.s32.totalorder %s40, 0
      %s952 = scalar_select %p951, %s40, 0
      %s953 = sadd.s32 %s952, %s950
      %s954 = smul.addr %s953, 8
      %s955 = scalar_lea.vmem %s17, %s954
      // Predicated region
      $region85: #{tz_regressor_forward.1} parent=83 // pred_check
        %p956 = pneg %p415
      $region86: #{tz_regressor_forward.1} parent=83 // pred_check_branch
        %958 = sbr.rel (%p956) target = $region88
      $region87: #{tz_regressor_forward.1} parent=83 // pred_region
        _
      $region88: #{tz_regressor_forward.1} parent=83 // pred_fallthru
        _
      // Predicated region
      $region89: #{tz_regressor_forward.1} parent=83 // pred_check
        %p959 = pneg %p443
      $region90: #{tz_regressor_forward.1} parent=83 // pred_check_branch
        %961 = sbr.rel (%p959) target = $region92
      $region91: #{tz_regressor_forward.1} parent=83 // pred_region
        _
      $region92: #{tz_regressor_forward.1} parent=83 // pred_fallthru
        _
    $region84: #{tz_regressor_forward.1} parent=5 // pred_fallthru
      _
    %p962 = scmp.le.s32.totalorder 2, %s30
    // Predicated region
    $region93: #{tz_regressor_forward.1} parent=5 // pred_check
      %p963 = pneg %p962
    $region94: #{tz_regressor_forward.1} parent=5 // pred_check_branch
      %965 = sbr.rel (%p963) target = $region96
    $region95: #{tz_regressor_forward.1} parent=5 // pred_region
      %s966 = ssub.s32 %s30, 2
      // Predicated region
      $region97: #{tz_regressor_forward.1} parent=95 // pred_check
        %p967 = pneg %p421
      $region98: #{tz_regressor_forward.1} parent=95 // pred_check_branch
        %969 = sbr.rel (%p967) target = $region100
      $region99: #{tz_regressor_forward.1} parent=95 // pred_region
        %p970 = scmp.lt.s32.totalorder %s41, 1
        %s971 = scalar_select %p970, %s41, 1
        %p972 = scmp.lt.s32.totalorder %s42, 0
        %s973 = scalar_select %p972, %s42, 0
        %s974 = sadd.s32 %s973, %s971
        %s975 = smul.addr %s974, 8
        %s976 = scalar_lea.vmem %s16, %s975
      $region100: #{tz_regressor_forward.1} parent=95 // pred_fallthru
        _
      // Predicated region
      $region101: #{tz_regressor_forward.1} parent=95 // pred_check
        %p977 = pneg %p449
      $region102: #{tz_regressor_forward.1} parent=95 // pred_check_branch
        %979 = sbr.rel (%p977) target = $region104
      $region103: #{tz_regressor_forward.1} parent=95 // pred_region
        %p980 = scmp.lt.s32.totalorder %s41, 1
        %s981 = scalar_select %p980, %s41, 1
        %p982 = scmp.lt.s32.totalorder %s42, 0
        %s983 = scalar_select %p982, %s42, 0
        %s984 = sadd.s32 %s983, %s981
        %s985 = smul.addr %s984, 8
        %s986 = scalar_lea.vmem %s17, %s985
      $region104: #{tz_regressor_forward.1} parent=95 // pred_fallthru
        _
    $region96: #{tz_regressor_forward.1} parent=5 // pred_fallthru
      _
  $region6: #{tz_regressor_forward.1} parent=0 // loop_footer
    %s34 = sadd.s32 1, %s30
  $region7: #{tz_regressor_forward.1} parent=0 // loop_footer_branch
    %29 = sbr.rel target = $region3
  $region8: #{tz_regressor_forward.1} parent=0 // loop_exit
    _

</llo_original>
